<compile_context>
chip_gen: v6e
topology: v6e:2x2x1
jax: 0.10.0
libtpu: 0.0.40
codegen_flags: <defaults>
</compile_context>

<pallas_src>
import functools

import jax
import jax.numpy as jnp
from jax.experimental import pallas as pl
from jax.experimental.pallas import tpu as pltpu

HIDDEN = 256


def _round_up(x, m):
    return ((x + m - 1) // m) * m


def fc_q_kernel(num_actions, na_pad,
                state_ref,
                w1_ref, b1_ref,
                q2w_ref, q2b_ref, q3w_ref, q3b_ref,
                i2w_ref, i2b_ref, i3w_ref, i3b_ref,
                out_ref):
    x = state_ref[...]  # [TB, state_dim] bf16

    # ---- fused layer 1 (q1 || i1 share the same LHS) ----
    h1 = jnp.dot(x, w1_ref[...], preferred_element_type=jnp.float32) + b1_ref[...]
    h1 = jnp.maximum(h1, 0.0)
    q_h = h1[:, :HIDDEN].astype(jnp.bfloat16)
    i_h = h1[:, HIDDEN:].astype(jnp.bfloat16)

    # ---- Q branch ----
    q = jnp.dot(q_h, q2w_ref[...], preferred_element_type=jnp.float32) + q2b_ref[...]
    q = jnp.maximum(q, 0.0).astype(jnp.bfloat16)
    q_out = jnp.dot(q, q3w_ref[...], preferred_element_type=jnp.float32) + q3b_ref[...]

    # ---- I branch ----
    i = jnp.dot(i_h, i2w_ref[...], preferred_element_type=jnp.float32) + i2b_ref[...]
    i = jnp.maximum(i, 0.0).astype(jnp.bfloat16)
    i = jnp.dot(i, i3w_ref[...], preferred_element_type=jnp.float32) + i3b_ref[...]
    i = jnp.maximum(i, 0.0)  # relu before log_softmax, matching the PyTorch module

    # masked log_softmax over the valid (unpadded) action lanes only
    col = jax.lax.broadcasted_iota(jnp.int32, i.shape, dimension=1)
    valid = col < num_actions
    m = jnp.max(jnp.where(valid, i, -jnp.inf), axis=-1, keepdims=True)
    shifted = i - m
    lse = jnp.log(jnp.sum(jnp.where(valid, jnp.exp(shifted), 0.0),
                          axis=-1, keepdims=True))
    logp = shifted - lse

    # single lane-dense store of the packed [q | logp | i] slab
    out_ref[...] = jnp.concatenate([q_out, logp, i], axis=-1).astype(out_ref.dtype)


def pack_fc_q_params(params, num_actions):
    """Fuse layer-1 weights, pad layer-3 to 128 lanes, cast weights to bf16."""
    na_pad = _round_up(max(num_actions, 1), 128)
    pad_cols = na_pad - num_actions

    def padw(w):
        return jnp.pad(w, ((0, 0), (0, pad_cols)))

    packed = {
        "w1": jnp.concatenate([params["q1w"], params["i1w"]], axis=1).astype(jnp.bfloat16),
        "b1": jnp.concatenate([params["q1b"], params["i1b"]], axis=1).astype(jnp.float32),
        "q2w": params["q2w"].astype(jnp.bfloat16),
        "q2b": params["q2b"].astype(jnp.float32),
        "q3w": padw(params["q3w"]).astype(jnp.bfloat16),
        "q3b": padw(params["q3b"]).astype(jnp.float32),
        "i2w": params["i2w"].astype(jnp.bfloat16),
        "i2b": params["i2b"].astype(jnp.float32),
        "i3w": padw(params["i3w"]).astype(jnp.bfloat16),
        "i3b": padw(params["i3b"]).astype(jnp.float32),
    }
    return packed, na_pad


def fc_q_forward(state, packed, num_actions, na_pad, *, max_tile_rows=256):
    """state: [B, state_dim] float32; packed: output of pack_fc_q_params."""
    B, state_dim = state.shape

    # batch tile: >= 8 rows (f32 sublane), up to 256 rows for large B
    TB = min(max_tile_rows, _round_up(B, 8))
    B_pad = _round_up(B, TB)

    x = state.astype(jnp.bfloat16)
    if B_pad != B:
        x = jnp.pad(x, ((0, B_pad - B), (0, 0)))

    weight_args = (
        packed["w1"], packed["b1"],
        packed["q2w"], packed["q2b"], packed["q3w"], packed["q3b"],
        packed["i2w"], packed["i2b"], packed["i3w"], packed["i3b"],
    )

    def resident(arr):
        # same block every grid step -> weights stay VMEM-resident, DMA'd once
        return pl.BlockSpec(arr.shape, lambda b: (0, 0))

    in_specs = [pl.BlockSpec((TB, state_dim), lambda b: (b, 0))]
    in_specs += [resident(a) for a in weight_args]
    out_specs = pl.BlockSpec((TB, 3 * na_pad), lambda b: (b, 0))
    out_shape = jax.ShapeDtypeStruct((B_pad, 3 * na_pad), jnp.float32)

    kernel = functools.partial(fc_q_kernel, num_actions, na_pad)

    slab = pl.pallas_call(
        kernel,
        grid=(B_pad // TB,),
        in_specs=in_specs,
        out_specs=out_specs,
        out_shape=out_shape,
        compiler_params=pltpu.CompilerParams(
            dimension_semantics=("parallel",),      # megacore sharding on v7x
            vmem_limit_bytes=32 * 1024 * 1024,      # safe on v5e/v6e/v7x
        ),
    )(x, *weight_args)

    q_out = slab[:B, 0:num_actions]
    logp = slab[:B, na_pad:na_pad + num_actions]
    i_out = slab[:B, 2 * na_pad:2 * na_pad + num_actions]
    return q_out, logp, i_out


def init_fc_q_params(key, state_dim, num_actions, hidden=HIDDEN):
    """nn.Linear-style init (U(-1/sqrt(fan_in), 1/sqrt(fan_in))).

    Weights are stored as [in, out]; biases as [1, out].
    """
    layer_dims = {
        "q1": (state_dim, hidden), "q2": (hidden, hidden), "q3": (hidden, num_actions),
        "i1": (state_dim, hidden), "i2": (hidden, hidden), "i3": (hidden, num_actions),
    }
    params = {}
    keys = jax.random.split(key, 2 * len(layer_dims))
    for idx, (name, (fan_in, fan_out)) in enumerate(layer_dims.items()):
        bound = 1.0 / (fan_in ** 0.5)
        wk, bk = keys[2 * idx], keys[2 * idx + 1]
        params[name + "w"] = jax.random.uniform(
            wk, (fan_in, fan_out), jnp.float32, minval=-bound, maxval=bound)
        params[name + "b"] = jax.random.uniform(
            bk, (1, fan_out), jnp.float32, minval=-bound, maxval=bound)
    return params


def fc_q_reference(state, params):
    """Pure-JAX f32 reference for correctness check."""
    relu = lambda v: jnp.maximum(v, 0.0)
    q = relu(state @ params["q1w"] + params["q1b"])
    q = relu(q @ params["q2w"] + params["q2b"])
    q_out = q @ params["q3w"] + params["q3b"]
    i = relu(state @ params["i1w"] + params["i1b"])
    i = relu(i @ params["i2w"] + params["i2b"])
    i = relu(i @ params["i3w"] + params["i3b"])
    logp = jax.nn.log_softmax(i, axis=1)
    return q_out, logp, i


if __name__ == "__main__":
    key = jax.random.PRNGKey(0)
    k_param, k_state = jax.random.split(key)

    batch = 2
    state_dim = 16
    num_actions = 8

    params = init_fc_q_params(k_param, state_dim, num_actions)
    state = jax.random.normal(k_state, (batch, state_dim), jnp.float32)

    packed, na_pad = pack_fc_q_params(params, num_actions)
    q_out, logp_out, i_out = fc_q_forward(state, packed, num_actions, na_pad)
    jax.block_until_ready((q_out, logp_out, i_out))

    # correctness check against pure-JAX f32 reference
    # (kernel uses bf16 MXU inputs with f32 accumulation -> loose tolerance)
    q_ref, logp_ref, i_ref = fc_q_reference(state, params)
    assert q_out.shape == (batch, num_actions)
    assert logp_out.shape == (batch, num_actions)
    assert i_out.shape == (batch, num_actions)
    assert jnp.allclose(q_out, q_ref, atol=5e-2, rtol=5e-2)
    assert jnp.allclose(logp_out, logp_ref, atol=5e-2, rtol=5e-2)
    assert jnp.allclose(i_out, i_ref, atol=5e-2, rtol=5e-2)

    print("KERNEL_OK")
</pallas_src>

<mosaic_0001>
module attributes {stable_mosaic.version = 11 : i64} {
  func.func @fc_q_kernel(%arg0: i32, %arg1: memref<8x16xbf16, #tpu.memory_space<vmem>>, %arg2: memref<16x512xbf16, #tpu.memory_space<vmem>>, %arg3: memref<1x512xf32, #tpu.memory_space<vmem>>, %arg4: memref<256x256xbf16, #tpu.memory_space<vmem>>, %arg5: memref<1x256xf32, #tpu.memory_space<vmem>>, %arg6: memref<256x128xbf16, #tpu.memory_space<vmem>>, %arg7: memref<1x128xf32, #tpu.memory_space<vmem>>, %arg8: memref<256x256xbf16, #tpu.memory_space<vmem>>, %arg9: memref<1x256xf32, #tpu.memory_space<vmem>>, %arg10: memref<256x128xbf16, #tpu.memory_space<vmem>>, %arg11: memref<1x128xf32, #tpu.memory_space<vmem>>, %arg12: memref<8x384xf32, #tpu.memory_space<vmem>>) attributes {dimension_semantics = [#tpu.dimension_semantics<parallel>], iteration_bounds = array<i64: 1>, scalar_prefetch = 0 : i64, scratch_operands = 0 : i64, tpu.core_type = #tpu.core_type<tc>, window_params = [{transform_indices = @transform_0, window_bounds = array<i64: 8, 16>}, {pipeline_mode = #tpu.pipeline_mode<synchronous>, transform_indices = @transform_1, window_bounds = array<i64: 16, 512>}, {pipeline_mode = #tpu.pipeline_mode<synchronous>, transform_indices = @transform_2, window_bounds = array<i64: 1, 512>}, {pipeline_mode = #tpu.pipeline_mode<synchronous>, transform_indices = @transform_3, window_bounds = array<i64: 256, 256>}, {pipeline_mode = #tpu.pipeline_mode<synchronous>, transform_indices = @transform_4, window_bounds = array<i64: 1, 256>}, {pipeline_mode = #tpu.pipeline_mode<synchronous>, transform_indices = @transform_5, window_bounds = array<i64: 256, 128>}, {pipeline_mode = #tpu.pipeline_mode<synchronous>, transform_indices = @transform_6, window_bounds = array<i64: 1, 128>}, {pipeline_mode = #tpu.pipeline_mode<synchronous>, transform_indices = @transform_7, window_bounds = array<i64: 256, 256>}, {pipeline_mode = #tpu.pipeline_mode<synchronous>, transform_indices = @transform_8, window_bounds = array<i64: 1, 256>}, {pipeline_mode = #tpu.pipeline_mode<synchronous>, transform_indices = @transform_9, window_bounds = array<i64: 256, 128>}, {pipeline_mode = #tpu.pipeline_mode<synchronous>, transform_indices = @transform_10, window_bounds = array<i64: 1, 128>}, {transform_indices = @transform_11, window_bounds = array<i64: 8, 384>}]} {
    %c0 = arith.constant 0 : index
    %c0_0 = arith.constant 0 : index
    %0 = vector.load %arg1[%c0, %c0_0] : memref<8x16xbf16, #tpu.memory_space<vmem>>, vector<8x16xbf16>
    %c0_1 = arith.constant 0 : index
    %c0_2 = arith.constant 0 : index
    %1 = vector.load %arg2[%c0_1, %c0_2] : memref<16x512xbf16, #tpu.memory_space<vmem>>, vector<16x512xbf16>
    %cst = arith.constant dense<0.000000e+00> : vector<8x512xf32>
    %2 = tpu.matmul %0, %1, %cst {dimension_numbers = #tpu.dot_dimension_numbers<[1], [0], [0], [1], [0, 0, 1, 1], [], []>} : vector<8x16xbf16>, vector<16x512xbf16>, vector<8x512xf32> -> vector<8x512xf32>
    %c0_3 = arith.constant 0 : index
    %c0_4 = arith.constant 0 : index
    %3 = vector.load %arg3[%c0_3, %c0_4] : memref<1x512xf32, #tpu.memory_space<vmem>>, vector<1x512xf32>
    %4 = vector.broadcast %3 : vector<1x512xf32> to vector<8x512xf32>
    %5 = arith.addf %2, %4 : vector<8x512xf32>
    %cst_5 = arith.constant 0.000000e+00 : f32
    %6 = vector.broadcast %cst_5 : f32 to vector<8x512xf32>
    %7 = arith.maximumf %5, %6 : vector<8x512xf32>
    %8 = vector.extract_strided_slice %7 {offsets = [0, 0], sizes = [8, 256], strides = [1, 1]} : vector<8x512xf32> to vector<8x256xf32>
    %9 = arith.truncf %8 : vector<8x256xf32> to vector<8x256xbf16>
    %10 = vector.extract_strided_slice %7 {offsets = [0, 256], sizes = [8, 256], strides = [1, 1]} : vector<8x512xf32> to vector<8x256xf32>
    %11 = arith.truncf %10 : vector<8x256xf32> to vector<8x256xbf16>
    %c0_6 = arith.constant 0 : index
    %c0_7 = arith.constant 0 : index
    %12 = vector.load %arg4[%c0_6, %c0_7] : memref<256x256xbf16, #tpu.memory_space<vmem>>, vector<256x256xbf16>
    %cst_8 = arith.constant dense<0.000000e+00> : vector<8x256xf32>
    %13 = tpu.matmul %9, %12, %cst_8 {dimension_numbers = #tpu.dot_dimension_numbers<[1], [0], [0], [1], [0, 0, 1, 1], [], []>} : vector<8x256xbf16>, vector<256x256xbf16>, vector<8x256xf32> -> vector<8x256xf32>
    %c0_9 = arith.constant 0 : index
    %c0_10 = arith.constant 0 : index
    %14 = vector.load %arg5[%c0_9, %c0_10] : memref<1x256xf32, #tpu.memory_space<vmem>>, vector<1x256xf32>
    %15 = vector.broadcast %14 : vector<1x256xf32> to vector<8x256xf32>
    %16 = arith.addf %13, %15 : vector<8x256xf32>
    %cst_11 = arith.constant 0.000000e+00 : f32
    %17 = vector.broadcast %cst_11 : f32 to vector<8x256xf32>
    %18 = arith.maximumf %16, %17 : vector<8x256xf32>
    %19 = arith.truncf %18 : vector<8x256xf32> to vector<8x256xbf16>
    %c0_12 = arith.constant 0 : index
    %c0_13 = arith.constant 0 : index
    %20 = vector.load %arg6[%c0_12, %c0_13] : memref<256x128xbf16, #tpu.memory_space<vmem>>, vector<256x128xbf16>
    %cst_14 = arith.constant dense<0.000000e+00> : vector<8x128xf32>
    %21 = tpu.matmul %19, %20, %cst_14 {dimension_numbers = #tpu.dot_dimension_numbers<[1], [0], [0], [1], [0, 0, 1, 1], [], []>} : vector<8x256xbf16>, vector<256x128xbf16>, vector<8x128xf32> -> vector<8x128xf32>
    %c0_15 = arith.constant 0 : index
    %c0_16 = arith.constant 0 : index
    %22 = vector.load %arg7[%c0_15, %c0_16] : memref<1x128xf32, #tpu.memory_space<vmem>>, vector<1x128xf32>
    %23 = vector.broadcast %22 : vector<1x128xf32> to vector<8x128xf32>
    %24 = arith.addf %21, %23 : vector<8x128xf32>
    %c0_17 = arith.constant 0 : index
    %c0_18 = arith.constant 0 : index
    %25 = vector.load %arg8[%c0_17, %c0_18] : memref<256x256xbf16, #tpu.memory_space<vmem>>, vector<256x256xbf16>
    %cst_19 = arith.constant dense<0.000000e+00> : vector<8x256xf32>
    %26 = tpu.matmul %11, %25, %cst_19 {dimension_numbers = #tpu.dot_dimension_numbers<[1], [0], [0], [1], [0, 0, 1, 1], [], []>} : vector<8x256xbf16>, vector<256x256xbf16>, vector<8x256xf32> -> vector<8x256xf32>
    %c0_20 = arith.constant 0 : index
    %c0_21 = arith.constant 0 : index
    %27 = vector.load %arg9[%c0_20, %c0_21] : memref<1x256xf32, #tpu.memory_space<vmem>>, vector<1x256xf32>
    %28 = vector.broadcast %27 : vector<1x256xf32> to vector<8x256xf32>
    %29 = arith.addf %26, %28 : vector<8x256xf32>
    %cst_22 = arith.constant 0.000000e+00 : f32
    %30 = vector.broadcast %cst_22 : f32 to vector<8x256xf32>
    %31 = arith.maximumf %29, %30 : vector<8x256xf32>
    %32 = arith.truncf %31 : vector<8x256xf32> to vector<8x256xbf16>
    %c0_23 = arith.constant 0 : index
    %c0_24 = arith.constant 0 : index
    %33 = vector.load %arg10[%c0_23, %c0_24] : memref<256x128xbf16, #tpu.memory_space<vmem>>, vector<256x128xbf16>
    %cst_25 = arith.constant dense<0.000000e+00> : vector<8x128xf32>
    %34 = tpu.matmul %32, %33, %cst_25 {dimension_numbers = #tpu.dot_dimension_numbers<[1], [0], [0], [1], [0, 0, 1, 1], [], []>} : vector<8x256xbf16>, vector<256x128xbf16>, vector<8x128xf32> -> vector<8x128xf32>
    %c0_26 = arith.constant 0 : index
    %c0_27 = arith.constant 0 : index
    %35 = vector.load %arg11[%c0_26, %c0_27] : memref<1x128xf32, #tpu.memory_space<vmem>>, vector<1x128xf32>
    %36 = vector.broadcast %35 : vector<1x128xf32> to vector<8x128xf32>
    %37 = arith.addf %34, %36 : vector<8x128xf32>
    %cst_28 = arith.constant 0.000000e+00 : f32
    %38 = vector.broadcast %cst_28 : f32 to vector<8x128xf32>
    %39 = arith.maximumf %37, %38 : vector<8x128xf32>
    %40 = tpu.iota {dimensions = array<i32: 1>} : vector<8x128xi32>
    %c8_i32 = arith.constant 8 : i32
    %41 = vector.broadcast %c8_i32 : i32 to vector<8x128xi32>
    %42 = arith.cmpi slt, %40, %41 : vector<8x128xi32>
    %cst_29 = arith.constant 0xFF800000 : f32
    %43 = vector.broadcast %cst_29 : f32 to vector<8x128xf32>
    %44 = arith.select %42, %39, %43 : vector<8x128xi1>, vector<8x128xf32>
    %cst_30 = arith.constant dense<0xFF800000> : vector<8xf32>
    %45 = vector.multi_reduction <maximumf>, %44, %cst_30 [1] : vector<8x128xf32> to vector<8xf32>
    %46 = vector.shape_cast %45 : vector<8xf32> to vector<8x1xf32>
    %47 = vector.broadcast %46 : vector<8x1xf32> to vector<8x128xf32>
    %48 = arith.subf %39, %47 : vector<8x128xf32>
    %49 = math.exp %48 : vector<8x128xf32>
    %cst_31 = arith.constant 0.000000e+00 : f32
    %50 = vector.broadcast %cst_31 : f32 to vector<8x128xf32>
    %51 = arith.select %42, %49, %50 : vector<8x128xi1>, vector<8x128xf32>
    %cst_32 = arith.constant dense<0.000000e+00> : vector<8xf32>
    %52 = vector.multi_reduction <add>, %51, %cst_32 [1] : vector<8x128xf32> to vector<8xf32>
    %53 = vector.shape_cast %52 : vector<8xf32> to vector<8x1xf32>
    %54 = math.log %53 : vector<8x1xf32>
    %55 = vector.broadcast %54 : vector<8x1xf32> to vector<8x128xf32>
    %56 = arith.subf %48, %55 : vector<8x128xf32>
    %57 = tpu.concatenate %24, %56, %39 in 1 : vector<8x128xf32>, vector<8x128xf32>, vector<8x128xf32> -> vector<8x384xf32>
    %c0_33 = arith.constant 0 : index
    %c0_34 = arith.constant 0 : index
    %58 = vector.load %arg12[%c0_33, %c0_34] : memref<8x384xf32, #tpu.memory_space<vmem>>, vector<8x384xf32>
    tpu.vector_store %arg12[%c0_33, %c0_34], %57 {strides = array<i32>} : memref<8x384xf32, #tpu.memory_space<vmem>>, vector<8x384xf32>,
    return
  }
  func.func @transform_0(%arg0: i32) -> (i32, i32) {
    %c0_i32 = arith.constant 0 : i32
    %c0_i32_0 = arith.constant 0 : i32
    return %arg0, %c0_i32 : i32, i32
  }
  func.func @transform_1(%arg0: i32) -> (i32, i32) {
    %c0_i32 = arith.constant 0 : i32
    %c0_i32_0 = arith.constant 0 : i32
    %c0_i32_1 = arith.constant 0 : i32
    return %c0_i32, %c0_i32_0 : i32, i32
  }
  func.func @transform_2(%arg0: i32) -> (i32, i32) {
    %c0_i32 = arith.constant 0 : i32
    %c0_i32_0 = arith.constant 0 : i32
    %c0_i32_1 = arith.constant 0 : i32
    return %c0_i32, %c0_i32_0 : i32, i32
  }
  func.func @transform_3(%arg0: i32) -> (i32, i32) {
    %c0_i32 = arith.constant 0 : i32
    %c0_i32_0 = arith.constant 0 : i32
    %c0_i32_1 = arith.constant 0 : i32
    return %c0_i32, %c0_i32_0 : i32, i32
  }
  func.func @transform_4(%arg0: i32) -> (i32, i32) {
    %c0_i32 = arith.constant 0 : i32
    %c0_i32_0 = arith.constant 0 : i32
    %c0_i32_1 = arith.constant 0 : i32
    return %c0_i32, %c0_i32_0 : i32, i32
  }
  func.func @transform_5(%arg0: i32) -> (i32, i32) {
    %c0_i32 = arith.constant 0 : i32
    %c0_i32_0 = arith.constant 0 : i32
    %c0_i32_1 = arith.constant 0 : i32
    return %c0_i32, %c0_i32_0 : i32, i32
  }
  func.func @transform_6(%arg0: i32) -> (i32, i32) {
    %c0_i32 = arith.constant 0 : i32
    %c0_i32_0 = arith.constant 0 : i32
    %c0_i32_1 = arith.constant 0 : i32
    return %c0_i32, %c0_i32_0 : i32, i32
  }
  func.func @transform_7(%arg0: i32) -> (i32, i32) {
    %c0_i32 = arith.constant 0 : i32
    %c0_i32_0 = arith.constant 0 : i32
    %c0_i32_1 = arith.constant 0 : i32
    return %c0_i32, %c0_i32_0 : i32, i32
  }
  func.func @transform_8(%arg0: i32) -> (i32, i32) {
    %c0_i32 = arith.constant 0 : i32
    %c0_i32_0 = arith.constant 0 : i32
    %c0_i32_1 = arith.constant 0 : i32
    return %c0_i32, %c0_i32_0 : i32, i32
  }
  func.func @transform_9(%arg0: i32) -> (i32, i32) {
    %c0_i32 = arith.constant 0 : i32
    %c0_i32_0 = arith.constant 0 : i32
    %c0_i32_1 = arith.constant 0 : i32
    return %c0_i32, %c0_i32_0 : i32, i32
  }
  func.func @transform_10(%arg0: i32) -> (i32, i32) {
    %c0_i32 = arith.constant 0 : i32
    %c0_i32_0 = arith.constant 0 : i32
    %c0_i32_1 = arith.constant 0 : i32
    return %c0_i32, %c0_i32_0 : i32, i32
  }
  func.func @transform_11(%arg0: i32) -> (i32, i32) {
    %c0_i32 = arith.constant 0 : i32
    %c0_i32_0 = arith.constant 0 : i32
    return %arg0, %c0_i32 : i32, i32
  }
}

</mosaic_0001>

<llo_original>
// kernel: tpu_custom_call.1
$region0: #{tpu_custom_call.1}
  #allocation0 [shape = 'u32[]', space=smem, size = 0x4, offset = 0x4, fixed_abs, tag = 'smem constant byte address 0x4 - core index']
  #allocation1 [shape = 'u32[144,128]{1,0:T(1,128)}', space=vmem, size = 0x12000, scoped, tag = 'internal scratch']
  %s0 = inlined_call_operand.hbm [shape: bf16[8,16], index: 0, kind: input, shape index: {}]
  %s1 = inlined_call_operand.hbm [shape: bf16[16,512], index: 1, kind: input, shape index: {}]
  %s2 = inlined_call_operand.hbm [shape: f32[1,512], index: 2, kind: input, shape index: {}]
  %s3 = inlined_call_operand.hbm [shape: bf16[256,256], index: 3, kind: input, shape index: {}]
  %s4 = inlined_call_operand.vmem [shape: f32[1,256], index: 4, kind: input, shape index: {}]
  %s5 = inlined_call_operand.hbm [shape: bf16[256,128], index: 5, kind: input, shape index: {}]
  %s6 = inlined_call_operand.vmem [shape: f32[1,128], index: 6, kind: input, shape index: {}]
  %s7 = inlined_call_operand.hbm [shape: bf16[256,256], index: 7, kind: input, shape index: {}]
  %s8 = inlined_call_operand.vmem [shape: f32[1,256], index: 8, kind: input, shape index: {}]
  %s9 = inlined_call_operand.hbm [shape: bf16[256,128], index: 9, kind: input, shape index: {}]
  %s10 = inlined_call_operand.vmem [shape: f32[1,128], index: 10, kind: input, shape index: {}]
  %s11 = inlined_call_operand.hbm [shape: f32[8,384], index: 11, kind: output, shape index: {}]
  %s12 = sld [smem:[#allocation0]]
  $region82: #{tpu_custom_call.1} parent=0
    _
  %s14 = ssub.s32 1, %s12
  %s15 = scalar_select 0, %s14, %s12
  $region1: #{tpu_custom_call.1} parent=0
    #allocation2 [shape = 'u8[2048]{0}', space=vmem, size = 0x800, scoped, tag = 'input window, operand 0, single buffered']
    #allocation3 [shape = 's32[1]{0}', space=sflag, size = 0x4, scoped, tag = 'scoped memory for tpu_custom_call.1']
    #allocation4 [shape = 's32[1]{0}', space=sflag, size = 0x4, scoped, tag = 'scoped memory for tpu_custom_call.1']
    #allocation5 [shape = 'u8[16384]{0}', space=vmem, size = 0x4000, scoped, tag = 'input window, operand 1, single buffered']
    #allocation6 [shape = 's32[1]{0}', space=sflag, size = 0x4, scoped, tag = 'scoped memory for tpu_custom_call.1']
    #allocation7 [shape = 'u8[2048]{0}', space=vmem, size = 0x800, scoped, tag = 'input window, operand 2, single buffered']
    #allocation8 [shape = 'u8[131072]{0}', space=vmem, size = 0x20000, scoped, tag = 'input window, operand 3, single buffered']
    #allocation9 [shape = 's32[1]{0}', space=sflag, size = 0x4, scoped, tag = 'scoped memory for tpu_custom_call.1']
    #allocation10 [shape = 'u8[65536]{0}', space=vmem, size = 0x10000, scoped, tag = 'input window, operand 5, single buffered']
    #allocation11 [shape = 'u8[131072]{0}', space=vmem, size = 0x20000, scoped, tag = 'input window, operand 7, single buffered']
    #allocation12 [shape = 's32[1]{0}', space=sflag, size = 0x4, scoped, tag = 'scoped memory for tpu_custom_call.1']
    #allocation13 [shape = 'u8[65536]{0}', space=vmem, size = 0x10000, scoped, tag = 'input window, operand 9, single buffered']
    #allocation14 [shape = 'u8[12288]{0}', space=vmem, size = 0x3000, scoped, tag = 'output window, operand 0, single buffered']
    %16 = vsyncpa [#allocation3], 0
    %17 = vsyncpa [#allocation6], 0
    %18 = vsyncpa [#allocation9], 0
    %19 = vsyncpa [#allocation12], 0
    %20 = vsyncpa [#allocation4], 0
    // Predicated region
    $region2: #{tpu_custom_call.1} parent=1 // pred_check
      _
    $region3: #{tpu_custom_call.1} parent=1 // pred_check_branch
      %22 = sbr.rel (0) target = $region5
    $region4: #{tpu_custom_call.1} parent=1 // pred_region
      %s24 = ssub.s32 64, 64
      %25 = vsyncadd [#allocation3], %s24
      %s27 = sshll.u32 [#allocation2], 4
      %s28 = int_to_ptr.vmem [resolvable:$true] %s27
      %30 = dma.hbm_to_vmem [thread:$0]  %s0, 64, %s28, [#allocation3]
    $region5: #{tpu_custom_call.1} parent=1 // pred_fallthru
      _
    // Predicated region
    $region6: #{tpu_custom_call.1} parent=1 // pred_check
      _
    $region7: #{tpu_custom_call.1} parent=1 // pred_check_branch
      %32 = sbr.rel (0) target = $region9
    $region8: #{tpu_custom_call.1} parent=1 // pred_region
      %s34 = ssub.s32 512, 512
      %35 = vsyncadd [#allocation6], %s34
      %s36 = sshll.u32 [#allocation5], 4
      %s37 = int_to_ptr.vmem [resolvable:$true] %s36
      %42 = dma.hbm_to_vmem [thread:$0]  %s1, 512, %s37, [#allocation6], 256, 256, 16
    $region9: #{tpu_custom_call.1} parent=1 // pred_fallthru
      _
    // Predicated region
    $region10: #{tpu_custom_call.1} parent=1 // pred_check
      _
    $region11: #{tpu_custom_call.1} parent=1 // pred_check_branch
      %44 = sbr.rel (0) target = $region13
    $region12: #{tpu_custom_call.1} parent=1 // pred_region
      %s46 = ssub.s32 64, 64
      %47 = vsyncadd [#allocation6], %s46
      %s49 = sshll.u32 [#allocation7], 4
      %s50 = int_to_ptr.vmem [resolvable:$true] %s49
      %52 = dma.hbm_to_vmem [thread:$0]  %s2, 64, %s50, [#allocation6]
    $region13: #{tpu_custom_call.1} parent=1 // pred_fallthru
      _
    // Predicated region
    $region14: #{tpu_custom_call.1} parent=1 // pred_check
      _
    $region15: #{tpu_custom_call.1} parent=1 // pred_check_branch
      %54 = sbr.rel (0) target = $region17
    $region16: #{tpu_custom_call.1} parent=1 // pred_region
      %s56 = ssub.s32 4096, 4096
      %57 = vsyncadd [#allocation9], %s56
      %s58 = sshll.u32 [#allocation8], 4
      %s59 = int_to_ptr.vmem [resolvable:$true] %s58
      %64 = dma.hbm_to_vmem [thread:$0]  %s3, 4096, %s59, [#allocation9], 128, 128, 8
    $region17: #{tpu_custom_call.1} parent=1 // pred_fallthru
      _
    // Predicated region
    $region18: #{tpu_custom_call.1} parent=1 // pred_check
      _
    $region19: #{tpu_custom_call.1} parent=1 // pred_check_branch
      %66 = sbr.rel (0) target = $region21
    $region20: #{tpu_custom_call.1} parent=1 // pred_region
      _
    $region21: #{tpu_custom_call.1} parent=1 // pred_fallthru
      _
    // Predicated region
    $region22: #{tpu_custom_call.1} parent=1 // pred_check
      _
    $region23: #{tpu_custom_call.1} parent=1 // pred_check_branch
      %68 = sbr.rel (0) target = $region25
    $region24: #{tpu_custom_call.1} parent=1 // pred_region
      %s70 = ssub.s32 2048, 2048
      %71 = vsyncadd [#allocation9], %s70
      %s72 = sshll.u32 [#allocation10], 4
      %s73 = int_to_ptr.vmem [resolvable:$true] %s72
      %78 = dma.hbm_to_vmem [thread:$0]  %s5, 2048, %s73, [#allocation9], 64, 64, 4
    $region25: #{tpu_custom_call.1} parent=1 // pred_fallthru
      _
    // Predicated region
    $region26: #{tpu_custom_call.1} parent=1 // pred_check
      _
    $region27: #{tpu_custom_call.1} parent=1 // pred_check_branch
      %80 = sbr.rel (0) target = $region29
    $region28: #{tpu_custom_call.1} parent=1 // pred_region
      _
    $region29: #{tpu_custom_call.1} parent=1 // pred_fallthru
      _
    // Predicated region
    $region30: #{tpu_custom_call.1} parent=1 // pred_check
      _
    $region31: #{tpu_custom_call.1} parent=1 // pred_check_branch
      %82 = sbr.rel (0) target = $region33
    $region32: #{tpu_custom_call.1} parent=1 // pred_region
      %s84 = ssub.s32 4096, 4096
      %85 = vsyncadd [#allocation12], %s84
      %s86 = sshll.u32 [#allocation11], 4
      %s87 = int_to_ptr.vmem [resolvable:$true] %s86
      %92 = dma.hbm_to_vmem [thread:$0]  %s7, 4096, %s87, [#allocation12], 128, 128, 8
    $region33: #{tpu_custom_call.1} parent=1 // pred_fallthru
      _
    // Predicated region
    $region34: #{tpu_custom_call.1} parent=1 // pred_check
      _
    $region35: #{tpu_custom_call.1} parent=1 // pred_check_branch
      %94 = sbr.rel (0) target = $region37
    $region36: #{tpu_custom_call.1} parent=1 // pred_region
      _
    $region37: #{tpu_custom_call.1} parent=1 // pred_fallthru
      _
    // Predicated region
    $region38: #{tpu_custom_call.1} parent=1 // pred_check
      _
    $region39: #{tpu_custom_call.1} parent=1 // pred_check_branch
      %96 = sbr.rel (0) target = $region41
    $region40: #{tpu_custom_call.1} parent=1 // pred_region
      %s98 = ssub.s32 2048, 2048
      %99 = vsyncadd [#allocation12], %s98
      %s100 = sshll.u32 [#allocation13], 4
      %s101 = int_to_ptr.vmem [resolvable:$true] %s100
      %106 = dma.hbm_to_vmem [thread:$0]  %s9, 2048, %s101, [#allocation12], 64, 64, 4
    $region41: #{tpu_custom_call.1} parent=1 // pred_fallthru
      _
    // Predicated region
    $region42: #{tpu_custom_call.1} parent=1 // pred_check
      _
    $region43: #{tpu_custom_call.1} parent=1 // pred_check_branch
      %108 = sbr.rel (0) target = $region45
    $region44: #{tpu_custom_call.1} parent=1 // pred_region
      _
    $region45: #{tpu_custom_call.1} parent=1 // pred_fallthru
      _
    // Predicated region
    $region46: #{tpu_custom_call.1} parent=1 // pred_check
      _
    $region47: #{tpu_custom_call.1} parent=1 // pred_check_branch
      %110 = sbr.rel (0) target = $region49
    $region48: #{tpu_custom_call.1} parent=1 // pred_region
      %111 = dma.done [#allocation3], 64
    $region49: #{tpu_custom_call.1} parent=1 // pred_fallthru
      _
    // Predicated region
    $region50: #{tpu_custom_call.1} parent=1 // pred_check
      _
    $region51: #{tpu_custom_call.1} parent=1 // pred_check_branch
      %113 = sbr.rel (0) target = $region53
    $region52: #{tpu_custom_call.1} parent=1 // pred_region
      %114 = dma.done [#allocation6], 512
    $region53: #{tpu_custom_call.1} parent=1 // pred_fallthru
      _
    // Predicated region
    $region54: #{tpu_custom_call.1} parent=1 // pred_check
      _
    $region55: #{tpu_custom_call.1} parent=1 // pred_check_branch
      %116 = sbr.rel (0) target = $region57
    $region56: #{tpu_custom_call.1} parent=1 // pred_region
      %117 = dma.done [#allocation6], 64
    $region57: #{tpu_custom_call.1} parent=1 // pred_fallthru
      _
    // Predicated region
    $region58: #{tpu_custom_call.1} parent=1 // pred_check
      _
    $region59: #{tpu_custom_call.1} parent=1 // pred_check_branch
      %119 = sbr.rel (0) target = $region61
    $region60: #{tpu_custom_call.1} parent=1 // pred_region
      %120 = dma.done [#allocation9], 4096
    $region61: #{tpu_custom_call.1} parent=1 // pred_fallthru
      _
    // Predicated region
    $region62: #{tpu_custom_call.1} parent=1 // pred_check
      _
    $region63: #{tpu_custom_call.1} parent=1 // pred_check_branch
      %122 = sbr.rel (0) target = $region65
    $region64: #{tpu_custom_call.1} parent=1 // pred_region
      %123 = dma.done [#allocation9], 2048
    $region65: #{tpu_custom_call.1} parent=1 // pred_fallthru
      _
    // Predicated region
    $region66: #{tpu_custom_call.1} parent=1 // pred_check
      _
    $region67: #{tpu_custom_call.1} parent=1 // pred_check_branch
      %125 = sbr.rel (0) target = $region69
    $region68: #{tpu_custom_call.1} parent=1 // pred_region
      %126 = dma.done [#allocation12], 4096
    $region69: #{tpu_custom_call.1} parent=1 // pred_fallthru
      _
    // Predicated region
    $region70: #{tpu_custom_call.1} parent=1 // pred_check
      _
    $region71: #{tpu_custom_call.1} parent=1 // pred_check_branch
      %128 = sbr.rel (0) target = $region73
    $region72: #{tpu_custom_call.1} parent=1 // pred_region
      %129 = dma.done [#allocation12], 2048
    $region73: #{tpu_custom_call.1} parent=1 // pred_fallthru
      _
    %v131 = vld [vmem:[#allocation2] sm:$0xf]
    %v132 = vld [vmem:[#allocation5] sm:$0xff]
    %v133 = vld [vmem:[#allocation5 + $0x8] sm:$0xff]
    %v134 = vld [vmem:[#allocation5 + $0x10] sm:$0xff]
    %v135 = vld [vmem:[#allocation5 + $0x18] sm:$0xff]
    %v136 = vld [vmem:[#allocation7] sm:$0xf]
    %v138 = vlaneseq
    %v139 = vshrl.u32 %v138, 7
    %v140 = vsub.s32 0, %v139
    %v141 = vrot.slane %v136, %v140
    %v142 = vlaneseq
    %v143 = vshrl.u32 %v142, 7
    %v144 = vsub.s32 1, %v143
    %v145 = vrot.slane %v136, %v144
    %v146 = vlaneseq
    %v147 = vshrl.u32 %v146, 7
    %v148 = vsub.s32 2, %v147
    %v149 = vrot.slane %v136, %v148
    %v150 = vlaneseq
    %v151 = vshrl.u32 %v150, 7
    %v152 = vsub.s32 3, %v151
    %v153 = vrot.slane %v136, %v152
    %v162 = vunpack.c.l.b16 %v132
    %v163 = vunpack.c.h.b16 %v132
    %v164 = vunpack.c.l.b16 %v133
    %v165 = vunpack.c.h.b16 %v133
    %v166 = vunpack.c.l.b16 %v134
    %v167 = vunpack.c.h.b16 %v134
    %v168 = vunpack.c.l.b16 %v135
    %v169 = vunpack.c.h.b16 %v135
    %v170 = vpack.c.b16 %v166, %v162
    %v171 = vpack.c.b16 %v167, %v163
    %v172 = vpack.c.b16 %v168, %v164
    %v173 = vpack.c.b16 %v169, %v165
    %vm178 = vcmask 130048
    %v180 = vsel %vm178, %v131, 0
    %182 = vmatprep.subr.bf16.mxu0 0
    %183 = vmatpush1.bf16.msra.mxu0 0
    %184 = vmatprep.subr.bf16.mxu0 0
    %185 = vmatpush1.bf16.msra.mxu0 0
    %186 = vmatprep.subr.bf16.mxu0 0
    %187 = vmatpush1.bf16.msra.mxu0 0
    %188 = vmatprep.subr.bf16.mxu0 0
    %189 = vmatpush1.bf16.msra.mxu0 0
    %190 = vmatprep.subr.bf16.mxu0 0
    %191 = vmatpush1.bf16.msra.mxu0 0
    %192 = vmatprep.subr.bf16.mxu0 0
    %193 = vmatpush1.bf16.msra.mxu0 0
    %194 = vmatprep.subr.bf16.mxu0 0
    %195 = vmatpush1.bf16.msra.mxu0 0
    %196 = vmatprep.subr.bf16.mxu0 %v171
    %197 = vmatpush1.bf16.msra.mxu0 %v170
    %198 = vmatprep.subr.bf16.mxu0 0
    %199 = vmatpush2.bf16.msra.mxu0 0
    %200 = vmatprep.subr.bf16.mxu0 0
    %201 = vmatpush2.bf16.msra.mxu0 0
    %202 = vmatprep.subr.bf16.mxu0 0
    %203 = vmatpush2.bf16.msra.mxu0 0
    %204 = vmatprep.subr.bf16.mxu0 0
    %205 = vmatpush2.bf16.msra.mxu0 0
    %206 = vmatprep.subr.bf16.mxu0 0
    %207 = vmatpush2.bf16.msra.mxu0 0
    %208 = vmatprep.subr.bf16.mxu0 0
    %209 = vmatpush2.bf16.msra.mxu0 0
    %210 = vmatprep.subr.bf16.mxu0 0
    %211 = vmatpush2.bf16.msra.mxu0 0
    %212 = vmatprep.subr.bf16.mxu0 0
    %213 = vmatpush2.bf16.msra.mxu0 0
    %214 = vmatprep.mubr.bf16.mxu0 0
    %215 = vmatmul.mubr.bf16.gmra.mxu0 %v180
    %v216 = vpop.f32.mrf.mxu0
    %v217 = vadd.f32 %v141, %v216
    %v218 = vpop.f32.mrf.mxu0
    %v219 = vadd.f32 %v145, %v218
    %v220 = vpop.f32.mrf.mxu0
    %v221 = vpop.f32.mrf.mxu0
    %222 = vdwg.mxu0
    %223 = vmatprep.subr.bf16.mxu0 0
    %224 = vmatpush1.bf16.msra.mxu0 0
    %225 = vmatprep.subr.bf16.mxu0 0
    %226 = vmatpush1.bf16.msra.mxu0 0
    %227 = vmatprep.subr.bf16.mxu0 0
    %228 = vmatpush1.bf16.msra.mxu0 0
    %229 = vmatprep.subr.bf16.mxu0 0
    %230 = vmatpush1.bf16.msra.mxu0 0
    %231 = vmatprep.subr.bf16.mxu0 0
    %232 = vmatpush1.bf16.msra.mxu0 0
    %233 = vmatprep.subr.bf16.mxu0 0
    %234 = vmatpush1.bf16.msra.mxu0 0
    %235 = vmatprep.subr.bf16.mxu0 0
    %236 = vmatpush1.bf16.msra.mxu0 0
    %237 = vmatprep.subr.bf16.mxu0 %v173
    %238 = vmatpush1.bf16.msra.mxu0 %v172
    %239 = vmatprep.subr.bf16.mxu0 0
    %240 = vmatpush2.bf16.msra.mxu0 0
    %241 = vmatprep.subr.bf16.mxu0 0
    %242 = vmatpush2.bf16.msra.mxu0 0
    %243 = vmatprep.subr.bf16.mxu0 0
    %244 = vmatpush2.bf16.msra.mxu0 0
    %245 = vmatprep.subr.bf16.mxu0 0
    %246 = vmatpush2.bf16.msra.mxu0 0
    %247 = vmatprep.subr.bf16.mxu0 0
    %248 = vmatpush2.bf16.msra.mxu0 0
    %249 = vmatprep.subr.bf16.mxu0 0
    %250 = vmatpush2.bf16.msra.mxu0 0
    %251 = vmatprep.subr.bf16.mxu0 0
    %252 = vmatpush2.bf16.msra.mxu0 0
    %253 = vmatprep.subr.bf16.mxu0 0
    %254 = vmatpush2.bf16.msra.mxu0 0
    %255 = vmatprep.mubr.bf16.mxu0 0
    %256 = vmatmul.mubr.bf16.gmra.mxu0 %v180
    %v257 = vpop.f32.mrf.mxu0
    %v258 = vadd.f32 %v149, %v257
    %v259 = vpop.f32.mrf.mxu0
    %v260 = vadd.f32 %v153, %v259
    %v261 = vpop.f32.mrf.mxu0
    %v262 = vpop.f32.mrf.mxu0
    %263 = vdwg.mxu0
    %v264 = vmax.f32 %v217, 0.0
    %v265 = vmax.f32 %v219, 0.0
    %v266 = vmax.f32 %v258, 0.0
    %v267 = vmax.f32 %v260, 0.0
    %v268 = vpack.c.bf16 %v264, %v264
    %v269 = vpack.c.bf16 %v265, %v265
    %v270 = vpack.c.bf16 %v266, %v266
    %v271 = vpack.c.bf16 %v267, %v267
    %v272 = vld [vmem:[#allocation8] sm:$0xff]
    %v273 = vld [vmem:[#allocation8 + $0x8] sm:$0xff]
    %v274 = vld [vmem:[#allocation8 + $0x10] sm:$0xff]
    %v275 = vld [vmem:[#allocation8 + $0x18] sm:$0xff]
    %v276 = vld [vmem:[#allocation8 + $0x20] sm:$0xff]
    %v277 = vld [vmem:[#allocation8 + $0x28] sm:$0xff]
    %v278 = vld [vmem:[#allocation8 + $0x30] sm:$0xff]
    %v279 = vld [vmem:[#allocation8 + $0x38] sm:$0xff]
    %v280 = vld [vmem:[#allocation8 + $0x40] sm:$0xff]
    %v281 = vld [vmem:[#allocation8 + $0x48] sm:$0xff]
    %v282 = vld [vmem:[#allocation8 + $0x50] sm:$0xff]
    %v283 = vld [vmem:[#allocation8 + $0x58] sm:$0xff]
    %v284 = vld [vmem:[#allocation8 + $0x60] sm:$0xff]
    %v285 = vld [vmem:[#allocation8 + $0x68] sm:$0xff]
    %v286 = vld [vmem:[#allocation8 + $0x70] sm:$0xff]
    %v287 = vld [vmem:[#allocation8 + $0x78] sm:$0xff]
    %v288 = vld [vmem:[#allocation8 + $0x80] sm:$0xff]
    %v289 = vld [vmem:[#allocation8 + $0x88] sm:$0xff]
    %v290 = vld [vmem:[#allocation8 + $0x90] sm:$0xff]
    %v291 = vld [vmem:[#allocation8 + $0x98] sm:$0xff]
    %v292 = vld [vmem:[#allocation8 + $0xa0] sm:$0xff]
    %v293 = vld [vmem:[#allocation8 + $0xa8] sm:$0xff]
    %v294 = vld [vmem:[#allocation8 + $0xb0] sm:$0xff]
    %v295 = vld [vmem:[#allocation8 + $0xb8] sm:$0xff]
    %v296 = vld [vmem:[#allocation8 + $0xc0] sm:$0xff]
    %v297 = vld [vmem:[#allocation8 + $0xc8] sm:$0xff]
    %v298 = vld [vmem:[#allocation8 + $0xd0] sm:$0xff]
    %v299 = vld [vmem:[#allocation8 + $0xd8] sm:$0xff]
    %v300 = vld [vmem:[#allocation8 + $0xe0] sm:$0xff]
    %v301 = vld [vmem:[#allocation8 + $0xe8] sm:$0xff]
    %v302 = vld [vmem:[#allocation8 + $0xf0] sm:$0xff]
    %v303 = vld [vmem:[#allocation8 + $0xf8] sm:$0xff]
    %v304 = vld [vmem:[%s4] sm:$0x3]
    %v306 = vlaneseq
    %v307 = vshrl.u32 %v306, 7
    %v308 = vsub.s32 0, %v307
    %v309 = vrot.slane %v304, %v308
    %v310 = vlaneseq
    %v311 = vshrl.u32 %v310, 7
    %v312 = vsub.s32 1, %v311
    %v313 = vrot.slane %v304, %v312
    %v348 = vunpack.c.l.b16 %v272
    %v349 = vunpack.c.h.b16 %v272
    %v350 = vunpack.c.l.b16 %v273
    %v351 = vunpack.c.h.b16 %v273
    %v352 = vunpack.c.l.b16 %v274
    %v353 = vunpack.c.h.b16 %v274
    %v354 = vunpack.c.l.b16 %v275
    %v355 = vunpack.c.h.b16 %v275
    %v356 = vunpack.c.l.b16 %v276
    %v357 = vunpack.c.h.b16 %v276
    %v358 = vunpack.c.l.b16 %v277
    %v359 = vunpack.c.h.b16 %v277
    %v360 = vunpack.c.l.b16 %v278
    %v361 = vunpack.c.h.b16 %v278
    %v362 = vunpack.c.l.b16 %v279
    %v363 = vunpack.c.h.b16 %v279
    %v364 = vunpack.c.l.b16 %v280
    %v365 = vunpack.c.h.b16 %v280
    %v366 = vunpack.c.l.b16 %v281
    %v367 = vunpack.c.h.b16 %v281
    %v368 = vunpack.c.l.b16 %v282
    %v369 = vunpack.c.h.b16 %v282
    %v370 = vunpack.c.l.b16 %v283
    %v371 = vunpack.c.h.b16 %v283
    %v372 = vunpack.c.l.b16 %v284
    %v373 = vunpack.c.h.b16 %v284
    %v374 = vunpack.c.l.b16 %v285
    %v375 = vunpack.c.h.b16 %v285
    %v376 = vunpack.c.l.b16 %v286
    %v377 = vunpack.c.h.b16 %v286
    %v378 = vunpack.c.l.b16 %v287
    %v379 = vunpack.c.h.b16 %v287
    %v380 = vunpack.c.l.b16 %v288
    %v381 = vunpack.c.h.b16 %v288
    %v382 = vunpack.c.l.b16 %v289
    %v383 = vunpack.c.h.b16 %v289
    %v384 = vunpack.c.l.b16 %v290
    %v385 = vunpack.c.h.b16 %v290
    %v386 = vunpack.c.l.b16 %v291
    %v387 = vunpack.c.h.b16 %v291
    %v388 = vunpack.c.l.b16 %v292
    %v389 = vunpack.c.h.b16 %v292
    %v390 = vunpack.c.l.b16 %v293
    %v391 = vunpack.c.h.b16 %v293
    %v392 = vunpack.c.l.b16 %v294
    %v393 = vunpack.c.h.b16 %v294
    %v394 = vunpack.c.l.b16 %v295
    %v395 = vunpack.c.h.b16 %v295
    %v396 = vunpack.c.l.b16 %v296
    %v397 = vunpack.c.h.b16 %v296
    %v398 = vunpack.c.l.b16 %v297
    %v399 = vunpack.c.h.b16 %v297
    %v400 = vunpack.c.l.b16 %v298
    %v401 = vunpack.c.h.b16 %v298
    %v402 = vunpack.c.l.b16 %v299
    %v403 = vunpack.c.h.b16 %v299
    %v404 = vunpack.c.l.b16 %v300
    %v405 = vunpack.c.h.b16 %v300
    %v406 = vunpack.c.l.b16 %v301
    %v407 = vunpack.c.h.b16 %v301
    %v408 = vunpack.c.l.b16 %v302
    %v409 = vunpack.c.h.b16 %v302
    %v410 = vunpack.c.l.b16 %v303
    %v411 = vunpack.c.h.b16 %v303
    %v412 = vpack.c.b16 %v350, %v348
    %v413 = vpack.c.b16 %v351, %v349
    %v414 = vpack.c.b16 %v354, %v352
    %v415 = vpack.c.b16 %v355, %v353
    %v416 = vpack.c.b16 %v358, %v356
    %v417 = vpack.c.b16 %v359, %v357
    %v418 = vpack.c.b16 %v362, %v360
    %v419 = vpack.c.b16 %v363, %v361
    %v420 = vpack.c.b16 %v366, %v364
    %v421 = vpack.c.b16 %v367, %v365
    %v422 = vpack.c.b16 %v370, %v368
    %v423 = vpack.c.b16 %v371, %v369
    %v424 = vpack.c.b16 %v374, %v372
    %v425 = vpack.c.b16 %v375, %v373
    %v426 = vpack.c.b16 %v378, %v376
    %v427 = vpack.c.b16 %v379, %v377
    %v428 = vpack.c.b16 %v382, %v380
    %v429 = vpack.c.b16 %v383, %v381
    %v430 = vpack.c.b16 %v386, %v384
    %v431 = vpack.c.b16 %v387, %v385
    %v432 = vpack.c.b16 %v390, %v388
    %v433 = vpack.c.b16 %v391, %v389
    %v434 = vpack.c.b16 %v394, %v392
    %v435 = vpack.c.b16 %v395, %v393
    %v436 = vpack.c.b16 %v398, %v396
    %v437 = vpack.c.b16 %v399, %v397
    %v438 = vpack.c.b16 %v402, %v400
    %v439 = vpack.c.b16 %v403, %v401
    %v440 = vpack.c.b16 %v406, %v404
    %v441 = vpack.c.b16 %v407, %v405
    %v442 = vpack.c.b16 %v410, %v408
    %v443 = vpack.c.b16 %v411, %v409
    %476 = vmatprep.subr.bf16.mxu0 %v427
    %477 = vmatpush1.bf16.msra.mxu0 %v426
    %478 = vmatprep.subr.bf16.mxu0 %v425
    %479 = vmatpush1.bf16.msra.mxu0 %v424
    %480 = vmatprep.subr.bf16.mxu0 %v423
    %481 = vmatpush1.bf16.msra.mxu0 %v422
    %482 = vmatprep.subr.bf16.mxu0 %v421
    %483 = vmatpush1.bf16.msra.mxu0 %v420
    %484 = vmatprep.subr.bf16.mxu0 %v419
    %485 = vmatpush1.bf16.msra.mxu0 %v418
    %486 = vmatprep.subr.bf16.mxu0 %v417
    %487 = vmatpush1.bf16.msra.mxu0 %v416
    %488 = vmatprep.subr.bf16.mxu0 %v415
    %489 = vmatpush1.bf16.msra.mxu0 %v414
    %490 = vmatprep.subr.bf16.mxu0 %v413
    %491 = vmatpush1.bf16.msra.mxu0 %v412
    %492 = vmatprep.subr.bf16.mxu0 %v443
    %493 = vmatpush2.bf16.msra.mxu0 %v442
    %494 = vmatprep.subr.bf16.mxu0 %v441
    %495 = vmatpush2.bf16.msra.mxu0 %v440
    %496 = vmatprep.subr.bf16.mxu0 %v439
    %497 = vmatpush2.bf16.msra.mxu0 %v438
    %498 = vmatprep.subr.bf16.mxu0 %v437
    %499 = vmatpush2.bf16.msra.mxu0 %v436
    %500 = vmatprep.subr.bf16.mxu0 %v435
    %501 = vmatpush2.bf16.msra.mxu0 %v434
    %502 = vmatprep.subr.bf16.mxu0 %v433
    %503 = vmatpush2.bf16.msra.mxu0 %v432
    %504 = vmatprep.subr.bf16.mxu0 %v431
    %505 = vmatpush2.bf16.msra.mxu0 %v430
    %506 = vmatprep.subr.bf16.mxu0 %v429
    %507 = vmatpush2.bf16.msra.mxu0 %v428
    %508 = vmatprep.mubr.bf16.mxu0 %v269
    %509 = vmatmul.mubr.bf16.gmra.mxu0 %v268
    %v510 = vpop.f32.mrf.mxu0
    %v511 = vadd.f32 %v309, %v510
    %v512 = vpop.f32.mrf.mxu0
    %v513 = vadd.f32 %v313, %v512
    %v514 = vpop.f32.mrf.mxu0
    %v515 = vpop.f32.mrf.mxu0
    %516 = vdwg.mxu0
    %v517 = vmax.f32 %v511, 0.0
    %v518 = vmax.f32 %v513, 0.0
    %v519 = vpack.c.bf16 %v517, %v517
    %v520 = vpack.c.bf16 %v518, %v518
    %v521 = vld [vmem:[#allocation10] sm:$0xf]
    %v522 = vld [vmem:[#allocation10 + $0x4] sm:$0xf]
    %v523 = vld [vmem:[#allocation10 + $0x8] sm:$0xf]
    %v524 = vld [vmem:[#allocation10 + $0xc] sm:$0xf]
    %v525 = vld [vmem:[#allocation10 + $0x10] sm:$0xf]
    %v526 = vld [vmem:[#allocation10 + $0x14] sm:$0xf]
    %v527 = vld [vmem:[#allocation10 + $0x18] sm:$0xf]
    %v528 = vld [vmem:[#allocation10 + $0x1c] sm:$0xf]
    %v529 = vld [vmem:[#allocation10 + $0x20] sm:$0xf]
    %v530 = vld [vmem:[#allocation10 + $0x24] sm:$0xf]
    %v531 = vld [vmem:[#allocation10 + $0x28] sm:$0xf]
    %v532 = vld [vmem:[#allocation10 + $0x2c] sm:$0xf]
    %v533 = vld [vmem:[#allocation10 + $0x30] sm:$0xf]
    %v534 = vld [vmem:[#allocation10 + $0x34] sm:$0xf]
    %v535 = vld [vmem:[#allocation10 + $0x38] sm:$0xf]
    %v536 = vld [vmem:[#allocation10 + $0x3c] sm:$0xf]
    %v537 = vld [vmem:[#allocation10 + $0x40] sm:$0xf]
    %v538 = vld [vmem:[#allocation10 + $0x44] sm:$0xf]
    %v539 = vld [vmem:[#allocation10 + $0x48] sm:$0xf]
    %v540 = vld [vmem:[#allocation10 + $0x4c] sm:$0xf]
    %v541 = vld [vmem:[#allocation10 + $0x50] sm:$0xf]
    %v542 = vld [vmem:[#allocation10 + $0x54] sm:$0xf]
    %v543 = vld [vmem:[#allocation10 + $0x58] sm:$0xf]
    %v544 = vld [vmem:[#allocation10 + $0x5c] sm:$0xf]
    %v545 = vld [vmem:[#allocation10 + $0x60] sm:$0xf]
    %v546 = vld [vmem:[#allocation10 + $0x64] sm:$0xf]
    %v547 = vld [vmem:[#allocation10 + $0x68] sm:$0xf]
    %v548 = vld [vmem:[#allocation10 + $0x6c] sm:$0xf]
    %v549 = vld [vmem:[#allocation10 + $0x70] sm:$0xf]
    %v550 = vld [vmem:[#allocation10 + $0x74] sm:$0xf]
    %v551 = vld [vmem:[#allocation10 + $0x78] sm:$0xf]
    %v552 = vld [vmem:[#allocation10 + $0x7c] sm:$0xf]
    %v553 = vld [vmem:[%s6] sm:$0x1]
    %v555 = vlaneseq
    %v556 = vshrl.u32 %v555, 7
    %v557 = vsub.s32 0, %v556
    %v558 = vrot.slane %v553, %v557
    %v592 = vunpack.c.l.b16 %v521
    %v593 = vunpack.c.l.b16 %v522
    %v594 = vunpack.c.l.b16 %v523
    %v595 = vunpack.c.l.b16 %v524
    %v596 = vunpack.c.l.b16 %v525
    %v597 = vunpack.c.l.b16 %v526
    %v598 = vunpack.c.l.b16 %v527
    %v599 = vunpack.c.l.b16 %v528
    %v600 = vunpack.c.l.b16 %v529
    %v601 = vunpack.c.l.b16 %v530
    %v602 = vunpack.c.l.b16 %v531
    %v603 = vunpack.c.l.b16 %v532
    %v604 = vunpack.c.l.b16 %v533
    %v605 = vunpack.c.l.b16 %v534
    %v606 = vunpack.c.l.b16 %v535
    %v607 = vunpack.c.l.b16 %v536
    %v608 = vunpack.c.l.b16 %v537
    %v609 = vunpack.c.l.b16 %v538
    %v610 = vunpack.c.l.b16 %v539
    %v611 = vunpack.c.l.b16 %v540
    %v612 = vunpack.c.l.b16 %v541
    %v613 = vunpack.c.l.b16 %v542
    %v614 = vunpack.c.l.b16 %v543
    %v615 = vunpack.c.l.b16 %v544
    %v616 = vunpack.c.l.b16 %v545
    %v617 = vunpack.c.l.b16 %v546
    %v618 = vunpack.c.l.b16 %v547
    %v619 = vunpack.c.l.b16 %v548
    %v620 = vunpack.c.l.b16 %v549
    %v621 = vunpack.c.l.b16 %v550
    %v622 = vunpack.c.l.b16 %v551
    %v623 = vunpack.c.l.b16 %v552
    %v624 = vpack.c.b16 %v593, %v592
    %v625 = vpack.c.b16 %v595, %v594
    %v626 = vpack.c.b16 %v597, %v596
    %v627 = vpack.c.b16 %v599, %v598
    %v628 = vpack.c.b16 %v601, %v600
    %v629 = vpack.c.b16 %v603, %v602
    %v630 = vpack.c.b16 %v605, %v604
    %v631 = vpack.c.b16 %v607, %v606
    %v632 = vpack.c.b16 %v609, %v608
    %v633 = vpack.c.b16 %v611, %v610
    %v634 = vpack.c.b16 %v613, %v612
    %v635 = vpack.c.b16 %v615, %v614
    %v636 = vpack.c.b16 %v617, %v616
    %v637 = vpack.c.b16 %v619, %v618
    %v638 = vpack.c.b16 %v621, %v620
    %v639 = vpack.c.b16 %v623, %v622
    %656 = vmatprep.subr.bf16.mxu0 0
    %657 = vmatpush1.bf16.msra.mxu0 %v631
    %658 = vmatprep.subr.bf16.mxu0 0
    %659 = vmatpush1.bf16.msra.mxu0 %v630
    %660 = vmatprep.subr.bf16.mxu0 0
    %661 = vmatpush1.bf16.msra.mxu0 %v629
    %662 = vmatprep.subr.bf16.mxu0 0
    %663 = vmatpush1.bf16.msra.mxu0 %v628
    %664 = vmatprep.subr.bf16.mxu0 0
    %665 = vmatpush1.bf16.msra.mxu0 %v627
    %666 = vmatprep.subr.bf16.mxu0 0
    %667 = vmatpush1.bf16.msra.mxu0 %v626
    %668 = vmatprep.subr.bf16.mxu0 0
    %669 = vmatpush1.bf16.msra.mxu0 %v625
    %670 = vmatprep.subr.bf16.mxu0 0
    %671 = vmatpush1.bf16.msra.mxu0 %v624
    %672 = vmatprep.subr.bf16.mxu0 0
    %673 = vmatpush2.bf16.msra.mxu0 %v639
    %674 = vmatprep.subr.bf16.mxu0 0
    %675 = vmatpush2.bf16.msra.mxu0 %v638
    %676 = vmatprep.subr.bf16.mxu0 0
    %677 = vmatpush2.bf16.msra.mxu0 %v637
    %678 = vmatprep.subr.bf16.mxu0 0
    %679 = vmatpush2.bf16.msra.mxu0 %v636
    %680 = vmatprep.subr.bf16.mxu0 0
    %681 = vmatpush2.bf16.msra.mxu0 %v635
    %682 = vmatprep.subr.bf16.mxu0 0
    %683 = vmatpush2.bf16.msra.mxu0 %v634
    %684 = vmatprep.subr.bf16.mxu0 0
    %685 = vmatpush2.bf16.msra.mxu0 %v633
    %686 = vmatprep.subr.bf16.mxu0 0
    %687 = vmatpush2.bf16.msra.mxu0 %v632
    %688 = vmatprep.mubr.bf16.mxu0 %v520
    %689 = vmatmul.mubr.bf16.gmra.mxu0 %v519
    %v690 = vpop.f32.mrf.mxu0
    %v691 = vadd.f32 %v558, %v690
    %v692 = vpop.f32.mrf.mxu0
    %v693 = vpop.f32.mrf.mxu0
    %v694 = vpop.f32.mrf.mxu0
    %695 = vdwg.mxu0
    %v696 = vld [vmem:[#allocation11] sm:$0xff]
    %v697 = vld [vmem:[#allocation11 + $0x8] sm:$0xff]
    %v698 = vld [vmem:[#allocation11 + $0x10] sm:$0xff]
    %v699 = vld [vmem:[#allocation11 + $0x18] sm:$0xff]
    %v700 = vld [vmem:[#allocation11 + $0x20] sm:$0xff]
    %v701 = vld [vmem:[#allocation11 + $0x28] sm:$0xff]
    %v702 = vld [vmem:[#allocation11 + $0x30] sm:$0xff]
    %v703 = vld [vmem:[#allocation11 + $0x38] sm:$0xff]
    %v704 = vld [vmem:[#allocation11 + $0x40] sm:$0xff]
    %v705 = vld [vmem:[#allocation11 + $0x48] sm:$0xff]
    %v706 = vld [vmem:[#allocation11 + $0x50] sm:$0xff]
    %v707 = vld [vmem:[#allocation11 + $0x58] sm:$0xff]
    %v708 = vld [vmem:[#allocation11 + $0x60] sm:$0xff]
    %v709 = vld [vmem:[#allocation11 + $0x68] sm:$0xff]
    %v710 = vld [vmem:[#allocation11 + $0x70] sm:$0xff]
    %v711 = vld [vmem:[#allocation11 + $0x78] sm:$0xff]
    %v712 = vld [vmem:[#allocation11 + $0x80] sm:$0xff]
    %v713 = vld [vmem:[#allocation11 + $0x88] sm:$0xff]
    %v714 = vld [vmem:[#allocation11 + $0x90] sm:$0xff]
    %v715 = vld [vmem:[#allocation11 + $0x98] sm:$0xff]
    %v716 = vld [vmem:[#allocation11 + $0xa0] sm:$0xff]
    %v717 = vld [vmem:[#allocation11 + $0xa8] sm:$0xff]
    %v718 = vld [vmem:[#allocation11 + $0xb0] sm:$0xff]
    %v719 = vld [vmem:[#allocation11 + $0xb8] sm:$0xff]
    %v720 = vld [vmem:[#allocation11 + $0xc0] sm:$0xff]
    %v721 = vld [vmem:[#allocation11 + $0xc8] sm:$0xff]
    %v722 = vld [vmem:[#allocation11 + $0xd0] sm:$0xff]
    %v723 = vld [vmem:[#allocation11 + $0xd8] sm:$0xff]
    %v724 = vld [vmem:[#allocation11 + $0xe0] sm:$0xff]
    %v725 = vld [vmem:[#allocation11 + $0xe8] sm:$0xff]
    %v726 = vld [vmem:[#allocation11 + $0xf0] sm:$0xff]
    %v727 = vld [vmem:[#allocation11 + $0xf8] sm:$0xff]
    %v728 = vld [vmem:[%s8] sm:$0x3]
    %v730 = vlaneseq
    %v731 = vshrl.u32 %v730, 7
    %v732 = vsub.s32 0, %v731
    %v733 = vrot.slane %v728, %v732
    %v734 = vlaneseq
    %v735 = vshrl.u32 %v734, 7
    %v736 = vsub.s32 1, %v735
    %v737 = vrot.slane %v728, %v736
    %v772 = vunpack.c.l.b16 %v696
    %v773 = vunpack.c.h.b16 %v696
    %v774 = vunpack.c.l.b16 %v697
    %v775 = vunpack.c.h.b16 %v697
    %v776 = vunpack.c.l.b16 %v698
    %v777 = vunpack.c.h.b16 %v698
    %v778 = vunpack.c.l.b16 %v699
    %v779 = vunpack.c.h.b16 %v699
    %v780 = vunpack.c.l.b16 %v700
    %v781 = vunpack.c.h.b16 %v700
    %v782 = vunpack.c.l.b16 %v701
    %v783 = vunpack.c.h.b16 %v701
    %v784 = vunpack.c.l.b16 %v702
    %v785 = vunpack.c.h.b16 %v702
    %v786 = vunpack.c.l.b16 %v703
    %v787 = vunpack.c.h.b16 %v703
    %v788 = vunpack.c.l.b16 %v704
    %v789 = vunpack.c.h.b16 %v704
    %v790 = vunpack.c.l.b16 %v705
    %v791 = vunpack.c.h.b16 %v705
    %v792 = vunpack.c.l.b16 %v706
    %v793 = vunpack.c.h.b16 %v706
    %v794 = vunpack.c.l.b16 %v707
    %v795 = vunpack.c.h.b16 %v707
    %v796 = vunpack.c.l.b16 %v708
    %v797 = vunpack.c.h.b16 %v708
    %v798 = vunpack.c.l.b16 %v709
    %v799 = vunpack.c.h.b16 %v709
    %v800 = vunpack.c.l.b16 %v710
    %v801 = vunpack.c.h.b16 %v710
    %v802 = vunpack.c.l.b16 %v711
    %v803 = vunpack.c.h.b16 %v711
    %v804 = vunpack.c.l.b16 %v712
    %v805 = vunpack.c.h.b16 %v712
    %v806 = vunpack.c.l.b16 %v713
    %v807 = vunpack.c.h.b16 %v713
    %v808 = vunpack.c.l.b16 %v714
    %v809 = vunpack.c.h.b16 %v714
    %v810 = vunpack.c.l.b16 %v715
    %v811 = vunpack.c.h.b16 %v715
    %v812 = vunpack.c.l.b16 %v716
    %v813 = vunpack.c.h.b16 %v716
    %v814 = vunpack.c.l.b16 %v717
    %v815 = vunpack.c.h.b16 %v717
    %v816 = vunpack.c.l.b16 %v718
    %v817 = vunpack.c.h.b16 %v718
    %v818 = vunpack.c.l.b16 %v719
    %v819 = vunpack.c.h.b16 %v719
    %v820 = vunpack.c.l.b16 %v720
    %v821 = vunpack.c.h.b16 %v720
    %v822 = vunpack.c.l.b16 %v721
    %v823 = vunpack.c.h.b16 %v721
    %v824 = vunpack.c.l.b16 %v722
    %v825 = vunpack.c.h.b16 %v722
    %v826 = vunpack.c.l.b16 %v723
    %v827 = vunpack.c.h.b16 %v723
    %v828 = vunpack.c.l.b16 %v724
    %v829 = vunpack.c.h.b16 %v724
    %v830 = vunpack.c.l.b16 %v725
    %v831 = vunpack.c.h.b16 %v725
    %v832 = vunpack.c.l.b16 %v726
    %v833 = vunpack.c.h.b16 %v726
    %v834 = vunpack.c.l.b16 %v727
    %v835 = vunpack.c.h.b16 %v727
    %v836 = vpack.c.b16 %v774, %v772
    %v837 = vpack.c.b16 %v775, %v773
    %v838 = vpack.c.b16 %v778, %v776
    %v839 = vpack.c.b16 %v779, %v777
    %v840 = vpack.c.b16 %v782, %v780
    %v841 = vpack.c.b16 %v783, %v781
    %v842 = vpack.c.b16 %v786, %v784
    %v843 = vpack.c.b16 %v787, %v785
    %v844 = vpack.c.b16 %v790, %v788
    %v845 = vpack.c.b16 %v791, %v789
    %v846 = vpack.c.b16 %v794, %v792
    %v847 = vpack.c.b16 %v795, %v793
    %v848 = vpack.c.b16 %v798, %v796
    %v849 = vpack.c.b16 %v799, %v797
    %v850 = vpack.c.b16 %v802, %v800
    %v851 = vpack.c.b16 %v803, %v801
    %v852 = vpack.c.b16 %v806, %v804
    %v853 = vpack.c.b16 %v807, %v805
    %v854 = vpack.c.b16 %v810, %v808
    %v855 = vpack.c.b16 %v811, %v809
    %v856 = vpack.c.b16 %v814, %v812
    %v857 = vpack.c.b16 %v815, %v813
    %v858 = vpack.c.b16 %v818, %v816
    %v859 = vpack.c.b16 %v819, %v817
    %v860 = vpack.c.b16 %v822, %v820
    %v861 = vpack.c.b16 %v823, %v821
    %v862 = vpack.c.b16 %v826, %v824
    %v863 = vpack.c.b16 %v827, %v825
    %v864 = vpack.c.b16 %v830, %v828
    %v865 = vpack.c.b16 %v831, %v829
    %v866 = vpack.c.b16 %v834, %v832
    %v867 = vpack.c.b16 %v835, %v833
    %900 = vmatprep.subr.bf16.mxu0 %v851
    %901 = vmatpush1.bf16.msra.mxu0 %v850
    %902 = vmatprep.subr.bf16.mxu0 %v849
    %903 = vmatpush1.bf16.msra.mxu0 %v848
    %904 = vmatprep.subr.bf16.mxu0 %v847
    %905 = vmatpush1.bf16.msra.mxu0 %v846
    %906 = vmatprep.subr.bf16.mxu0 %v845
    %907 = vmatpush1.bf16.msra.mxu0 %v844
    %908 = vmatprep.subr.bf16.mxu0 %v843
    %909 = vmatpush1.bf16.msra.mxu0 %v842
    %910 = vmatprep.subr.bf16.mxu0 %v841
    %911 = vmatpush1.bf16.msra.mxu0 %v840
    %912 = vmatprep.subr.bf16.mxu0 %v839
    %913 = vmatpush1.bf16.msra.mxu0 %v838
    %914 = vmatprep.subr.bf16.mxu0 %v837
    %915 = vmatpush1.bf16.msra.mxu0 %v836
    %916 = vmatprep.subr.bf16.mxu0 %v867
    %917 = vmatpush2.bf16.msra.mxu0 %v866
    %918 = vmatprep.subr.bf16.mxu0 %v865
    %919 = vmatpush2.bf16.msra.mxu0 %v864
    %920 = vmatprep.subr.bf16.mxu0 %v863
    %921 = vmatpush2.bf16.msra.mxu0 %v862
    %922 = vmatprep.subr.bf16.mxu0 %v861
    %923 = vmatpush2.bf16.msra.mxu0 %v860
    %924 = vmatprep.subr.bf16.mxu0 %v859
    %925 = vmatpush2.bf16.msra.mxu0 %v858
    %926 = vmatprep.subr.bf16.mxu0 %v857
    %927 = vmatpush2.bf16.msra.mxu0 %v856
    %928 = vmatprep.subr.bf16.mxu0 %v855
    %929 = vmatpush2.bf16.msra.mxu0 %v854
    %930 = vmatprep.subr.bf16.mxu0 %v853
    %931 = vmatpush2.bf16.msra.mxu0 %v852
    %932 = vmatprep.mubr.bf16.mxu0 %v271
    %933 = vmatmul.mubr.bf16.gmra.mxu0 %v270
    %v934 = vpop.f32.mrf.mxu0
    %v935 = vadd.f32 %v733, %v934
    %v936 = vpop.f32.mrf.mxu0
    %v937 = vadd.f32 %v737, %v936
    %v938 = vpop.f32.mrf.mxu0
    %v939 = vpop.f32.mrf.mxu0
    %940 = vdwg.mxu0
    %v941 = vmax.f32 %v935, 0.0
    %v942 = vmax.f32 %v937, 0.0
    %v943 = vpack.c.bf16 %v941, %v941
    %v944 = vpack.c.bf16 %v942, %v942
    %v945 = vld [vmem:[#allocation13] sm:$0xf]
    %v946 = vld [vmem:[#allocation13 + $0x4] sm:$0xf]
    %v947 = vld [vmem:[#allocation13 + $0x8] sm:$0xf]
    %v948 = vld [vmem:[#allocation13 + $0xc] sm:$0xf]
    %v949 = vld [vmem:[#allocation13 + $0x10] sm:$0xf]
    %v950 = vld [vmem:[#allocation13 + $0x14] sm:$0xf]
    %v951 = vld [vmem:[#allocation13 + $0x18] sm:$0xf]
    %v952 = vld [vmem:[#allocation13 + $0x1c] sm:$0xf]
    %v953 = vld [vmem:[#allocation13 + $0x20] sm:$0xf]
    %v954 = vld [vmem:[#allocation13 + $0x24] sm:$0xf]
    %v955 = vld [vmem:[#allocation13 + $0x28] sm:$0xf]
    %v956 = vld [vmem:[#allocation13 + $0x2c] sm:$0xf]
    %v957 = vld [vmem:[#allocation13 + $0x30] sm:$0xf]
    %v958 = vld [vmem:[#allocation13 + $0x34] sm:$0xf]
    %v959 = vld [vmem:[#allocation13 + $0x38] sm:$0xf]
    %v960 = vld [vmem:[#allocation13 + $0x3c] sm:$0xf]
    %v961 = vld [vmem:[#allocation13 + $0x40] sm:$0xf]
    %v962 = vld [vmem:[#allocation13 + $0x44] sm:$0xf]
    %v963 = vld [vmem:[#allocation13 + $0x48] sm:$0xf]
    %v964 = vld [vmem:[#allocation13 + $0x4c] sm:$0xf]
    %v965 = vld [vmem:[#allocation13 + $0x50] sm:$0xf]
    %v966 = vld [vmem:[#allocation13 + $0x54] sm:$0xf]
    %v967 = vld [vmem:[#allocation13 + $0x58] sm:$0xf]
    %v968 = vld [vmem:[#allocation13 + $0x5c] sm:$0xf]
    %v969 = vld [vmem:[#allocation13 + $0x60] sm:$0xf]
    %v970 = vld [vmem:[#allocation13 + $0x64] sm:$0xf]
    %v971 = vld [vmem:[#allocation13 + $0x68] sm:$0xf]
    %v972 = vld [vmem:[#allocation13 + $0x6c] sm:$0xf]
    %v973 = vld [vmem:[#allocation13 + $0x70] sm:$0xf]
    %v974 = vld [vmem:[#allocation13 + $0x74] sm:$0xf]
    %v975 = vld [vmem:[#allocation13 + $0x78] sm:$0xf]
    %v976 = vld [vmem:[#allocation13 + $0x7c] sm:$0xf]
    %v977 = vld [vmem:[%s10] sm:$0x1]
    %v979 = vlaneseq
    %v980 = vshrl.u32 %v979, 7
    %v981 = vsub.s32 0, %v980
    %v982 = vrot.slane %v977, %v981
    %v1016 = vunpack.c.l.b16 %v945
    %v1017 = vunpack.c.l.b16 %v946
    %v1018 = vunpack.c.l.b16 %v947
    %v1019 = vunpack.c.l.b16 %v948
    %v1020 = vunpack.c.l.b16 %v949
    %v1021 = vunpack.c.l.b16 %v950
    %v1022 = vunpack.c.l.b16 %v951
    %v1023 = vunpack.c.l.b16 %v952
    %v1024 = vunpack.c.l.b16 %v953
    %v1025 = vunpack.c.l.b16 %v954
    %v1026 = vunpack.c.l.b16 %v955
    %v1027 = vunpack.c.l.b16 %v956
    %v1028 = vunpack.c.l.b16 %v957
    %v1029 = vunpack.c.l.b16 %v958
    %v1030 = vunpack.c.l.b16 %v959
    %v1031 = vunpack.c.l.b16 %v960
    %v1032 = vunpack.c.l.b16 %v961
    %v1033 = vunpack.c.l.b16 %v962
    %v1034 = vunpack.c.l.b16 %v963
    %v1035 = vunpack.c.l.b16 %v964
    %v1036 = vunpack.c.l.b16 %v965
    %v1037 = vunpack.c.l.b16 %v966
    %v1038 = vunpack.c.l.b16 %v967
    %v1039 = vunpack.c.l.b16 %v968
    %v1040 = vunpack.c.l.b16 %v969
    %v1041 = vunpack.c.l.b16 %v970
    %v1042 = vunpack.c.l.b16 %v971
    %v1043 = vunpack.c.l.b16 %v972
    %v1044 = vunpack.c.l.b16 %v973
    %v1045 = vunpack.c.l.b16 %v974
    %v1046 = vunpack.c.l.b16 %v975
    %v1047 = vunpack.c.l.b16 %v976
    %v1048 = vpack.c.b16 %v1017, %v1016
    %v1049 = vpack.c.b16 %v1019, %v1018
    %v1050 = vpack.c.b16 %v1021, %v1020
    %v1051 = vpack.c.b16 %v1023, %v1022
    %v1052 = vpack.c.b16 %v1025, %v1024
    %v1053 = vpack.c.b16 %v1027, %v1026
    %v1054 = vpack.c.b16 %v1029, %v1028
    %v1055 = vpack.c.b16 %v1031, %v1030
    %v1056 = vpack.c.b16 %v1033, %v1032
    %v1057 = vpack.c.b16 %v1035, %v1034
    %v1058 = vpack.c.b16 %v1037, %v1036
    %v1059 = vpack.c.b16 %v1039, %v1038
    %v1060 = vpack.c.b16 %v1041, %v1040
    %v1061 = vpack.c.b16 %v1043, %v1042
    %v1062 = vpack.c.b16 %v1045, %v1044
    %v1063 = vpack.c.b16 %v1047, %v1046
    %1080 = vmatprep.subr.bf16.mxu0 0
    %1081 = vmatpush1.bf16.msra.mxu0 %v1055
    %1082 = vmatprep.subr.bf16.mxu0 0
    %1083 = vmatpush1.bf16.msra.mxu0 %v1054
    %1084 = vmatprep.subr.bf16.mxu0 0
    %1085 = vmatpush1.bf16.msra.mxu0 %v1053
    %1086 = vmatprep.subr.bf16.mxu0 0
    %1087 = vmatpush1.bf16.msra.mxu0 %v1052
    %1088 = vmatprep.subr.bf16.mxu0 0
    %1089 = vmatpush1.bf16.msra.mxu0 %v1051
    %1090 = vmatprep.subr.bf16.mxu0 0
    %1091 = vmatpush1.bf16.msra.mxu0 %v1050
    %1092 = vmatprep.subr.bf16.mxu0 0
    %1093 = vmatpush1.bf16.msra.mxu0 %v1049
    %1094 = vmatprep.subr.bf16.mxu0 0
    %1095 = vmatpush1.bf16.msra.mxu0 %v1048
    %1096 = vmatprep.subr.bf16.mxu0 0
    %1097 = vmatpush2.bf16.msra.mxu0 %v1063
    %1098 = vmatprep.subr.bf16.mxu0 0
    %1099 = vmatpush2.bf16.msra.mxu0 %v1062
    %1100 = vmatprep.subr.bf16.mxu0 0
    %1101 = vmatpush2.bf16.msra.mxu0 %v1061
    %1102 = vmatprep.subr.bf16.mxu0 0
    %1103 = vmatpush2.bf16.msra.mxu0 %v1060
    %1104 = vmatprep.subr.bf16.mxu0 0
    %1105 = vmatpush2.bf16.msra.mxu0 %v1059
    %1106 = vmatprep.subr.bf16.mxu0 0
    %1107 = vmatpush2.bf16.msra.mxu0 %v1058
    %1108 = vmatprep.subr.bf16.mxu0 0
    %1109 = vmatpush2.bf16.msra.mxu0 %v1057
    %1110 = vmatprep.subr.bf16.mxu0 0
    %1111 = vmatpush2.bf16.msra.mxu0 %v1056
    %1112 = vmatprep.mubr.bf16.mxu0 %v944
    %1113 = vmatmul.mubr.bf16.gmra.mxu0 %v943
    %v1114 = vpop.f32.mrf.mxu0
    %v1115 = vadd.f32 %v982, %v1114
    %v1116 = vpop.f32.mrf.mxu0
    %v1117 = vpop.f32.mrf.mxu0
    %v1118 = vpop.f32.mrf.mxu0
    %1119 = vdwg.mxu0
    %v1120 = vmax.f32 %v1115, 0.0
    %v1121 = vlaneseq
    %v1122 = vand.u32 %v1121, 127
    %vm1123 = vcmp.lt.s32.totalorder %v1122, 8
    %v1124 = vsel %vm1123, %v1120, -inf
    %1125 = vmax.xlane.f32.xlu0 %v1124
    %v1126 = vpop.xlane.xlu0 %1125
    %v1127 = vsub.f32 %v1120, %v1126
    %v1128 = vmul.f32 %v1127, 1.442695
    %v1129 = vpow.pop %v1128
    %v1130 = vsel %vm1123, %v1129, 0.0
    %1131 = vadd.xlane.f32.xlu0 %v1130
    %v1132 = vpop.xlane.xlu0 %1131
    %v1133 = vlog2.pop %v1132
    %v1134 = vmul.f32 %v1133, 0.6931472
    %v1135 = vsub.f32 %v1127, %v1134
    %1136 = vst [vmem:[#allocation14] sm:$0xff] %v691
    %1137 = vst [vmem:[#allocation14 + $0x8] sm:$0xff] %v1135
    %1138 = vst [vmem:[#allocation14 + $0x10] sm:$0xff] %v1120
    // Predicated region
    $region74: #{tpu_custom_call.1} parent=1 // pred_check
      _
    $region75: #{tpu_custom_call.1} parent=1 // pred_check_branch
      %1140 = sbr.rel (0) target = $region77
    $region76: #{tpu_custom_call.1} parent=1 // pred_region
      %s1142 = ssub.s32 384, 384
      %1143 = vsyncadd [#allocation4], %s1142
      %s1145 = sshll.u32 [#allocation14], 4
      %s1146 = int_to_ptr.vmem [resolvable:$true] %s1145
      %1148 = dma.vmem_to_hbm [thread:$0]  %s1146, 384, %s11, [#allocation4]
    $region77: #{tpu_custom_call.1} parent=1 // pred_fallthru
      _
    // Predicated region
    $region78: #{tpu_custom_call.1} parent=1 // pred_check
      _
    $region79: #{tpu_custom_call.1} parent=1 // pred_check_branch
      %1150 = sbr.rel (0) target = $region81
    $region80: #{tpu_custom_call.1} parent=1 // pred_region
      %1151 = dma.done [#allocation4], 384
    $region81: #{tpu_custom_call.1} parent=1 // pred_fallthru
      _
    %1152 = vsyncpa [#allocation3], 1
    %1153 = vsyncpa [#allocation6], 1
    %1154 = vsyncpa [#allocation9], 1
    %1155 = vsyncpa [#allocation12], 1
    %1156 = vsyncpa [#allocation4], 1

</llo_original>
